<compile_context>
chip_gen: v6e
topology: v6e:2x2x1
jax: 0.10.0
libtpu: 0.0.40
codegen_flags: <defaults>
</compile_context>

<pallas_src>
import jax
import jax.numpy as jnp
from jax.experimental import pallas as pl
from jax.experimental.pallas import tpu as pltpu


# ---------------------------------------------------------------------------
# Kernel: pure broadcasted add of a VMEM-resident PE tile.
# ---------------------------------------------------------------------------
def _pe_add_kernel(x_ref, pe_ref, o_ref):
    # x_ref / o_ref: (bt, ct) VMEM tiles; pe_ref: (1, ct) tile broadcast over rows.
    o_ref[...] = x_ref[...] + pe_ref[...]


# ---------------------------------------------------------------------------
# Trace-time PE table (matches the PyTorch __init__ fill).
# ---------------------------------------------------------------------------
def _build_pe_table(seq_len, d_embed):
    position = jnp.arange(seq_len, dtype=jnp.float32)[:, None]            # (S, 1)
    _2i = jnp.arange(0, d_embed, 2, dtype=jnp.float32)                    # (ceil(D/2),)
    angles = position / jnp.power(jnp.float32(10000.0), _2i / jnp.float32(d_embed))
    pe = jnp.zeros((seq_len, d_embed), jnp.float32)
    pe = pe.at[:, 0::2].set(jnp.sin(angles))
    pe = pe.at[:, 1::2].set(jnp.cos(angles)[:, : d_embed // 2])
    return pe


# ---------------------------------------------------------------------------
# Tiling helpers.
# ---------------------------------------------------------------------------
def _vmem_capacity_bytes():
    try:
        return int(pltpu.get_tpu_info().vmem_capacity_bytes)
    except Exception:
        return 128 << 20  # conservative v5e/v6e-class assumption


def _pick_tiles(B, SD, itemsize, budget_bytes):
    """Pick (batch_tile, sd_chunk) so every block fits the per-buffer budget,
    respects the (8,128) tiling rule and sublane packing, and keeps the grid
    shardable across 2 TensorCores when the batch is large."""
    pack = max(1, 4 // itemsize)          # f32 -> 1, bf16 -> 2, int8 -> 4
    row_mult = 8 * pack                   # batch-tile granule (packed sublanes)
    row_bytes = SD * itemsize

    if row_bytes * min(B, row_mult) <= budget_bytes:
        # Whole rows fit: no SD chunking.
        ct = SD
        bt = min(B, max(1, budget_bytes // row_bytes))
        if bt >= row_mult:
            bt = (bt // row_mult) * row_mult
        bt = min(bt, B)
        # Keep >=2 batch steps when the batch is big enough (v7x 2-TC sharding).
        if B > row_mult and bt >= B:
            half = -(-B // 2)
            bt = max(row_mult, (half // row_mult) * row_mult)
    else:
        # Rows too wide: tile the flattened S*D axis in lane chunks (x128).
        bt = min(B, row_mult)
        ct = (budget_bytes // (bt * itemsize)) // 128 * 128
        ct = max(128, ct)
        ct = min(ct, SD)
    return bt, ct


def _vmem_limit_bytes(bt, ct, itemsize, pe_bufs, capacity):
    # Double-buffered x + out, pe_bufs PE buffers (rows padded to 8 sublanes).
    need = itemsize * (2 * bt * ct + 2 * bt * ct + pe_bufs * 8 * ct)
    limit = max(32 << 20, 2 * need, need + (4 << 20))
    return int(min(limit, int(capacity * 3 // 4)))


# ---------------------------------------------------------------------------
# Wrapper: Positional_Encoding.forward(x, positional_type).
# ---------------------------------------------------------------------------
def positional_encoding_forward(x, positional_type, d_embed, *, donate_x=False):
    assert positional_type in ("agent", "time", "both", "both2")
    B, S, D = x.shape
    assert D == d_embed

    # --- PE slab for this sequence length, built at trace time --------------
    pe = _build_pe_table(S, d_embed)      # == self.pe[:S]
    pe2 = pe                              # pe2 is filled identically at init
    if positional_type in ("agent", "time"):
        PE = pe
    elif positional_type == "both":
        PE = jnp.concatenate([pe[: S // 2, :], pe2[S // 2:, :]], axis=0)
    else:  # 'both2'
        PE = pe + pe                      # scale folded at trace time
    PE = PE.astype(x.dtype)

    # --- lane-dense 2-D view: (B, S*D) --------------------------------------
    SD = S * D
    x2 = x.reshape(B, SD)
    pe2d = PE.reshape(1, SD)

    itemsize = x2.dtype.itemsize
    capacity = _vmem_capacity_bytes()
    budget = (4 << 20) if capacity >= (96 << 20) else (2 << 20)
    bt, ct = _pick_tiles(B, SD, itemsize, budget)
    nb, nc = pl.cdiv(B, bt), pl.cdiv(SD, ct)
    grid = (nb, nc)

    x_spec = pl.BlockSpec((bt, ct), lambda b, c: (b, c))
    out_spec = pl.BlockSpec((bt, ct), lambda b, c: (b, c))

    def _run(pe_spec, pe_bufs):
        return pl.pallas_call(
            _pe_add_kernel,
            out_shape=jax.ShapeDtypeStruct((B, SD), x.dtype),
            grid=grid,
            in_specs=[x_spec, pe_spec],
            out_specs=out_spec,
            input_output_aliases=({0: 0} if donate_x else {}),
            compiler_params=pltpu.CompilerParams(
                dimension_semantics=("parallel", "parallel"),
                vmem_limit_bytes=_vmem_limit_bytes(bt, ct, itemsize, pe_bufs, capacity),
            ),
        )(x2, pe2d)

    if nc == 1:
        # PE index_map is constant across the grid: a single resident buffer
        # suffices (saves one S*D*itemsize VMEM buffer; matters most on v7x).
        try:
            out2 = _run(
                pl.BlockSpec((1, ct), lambda b, c: (0, c),
                             pipeline_mode=pl.Buffered(1)),
                pe_bufs=1,
            )
            return out2.reshape(B, S, D)
        except Exception:
            pass  # fall back to the default double-buffered PE spec below
    out2 = _run(pl.BlockSpec((1, ct), lambda b, c: (0, c)), pe_bufs=2)
    return out2.reshape(B, S, D)


# ---------------------------------------------------------------------------
# Pure-JAX reference mirroring the PyTorch module.
# ---------------------------------------------------------------------------
def _reference(x, positional_type, d_embed, max_seq_len):
    position = jnp.arange(0, max_seq_len, dtype=jnp.float32)[:, None]
    _2i = jnp.arange(0, d_embed, 2, dtype=jnp.float32)
    pe = jnp.zeros((max_seq_len, d_embed), jnp.float32)
    pe = pe.at[:, 0::2].set(jnp.sin(position / 10000 ** (_2i / d_embed)))
    pe = pe.at[:, 1::2].set(jnp.cos(position / 10000 ** (_2i / d_embed)))
    pe2 = pe
    S = x.shape[1]
    if positional_type in ("agent", "time"):
        PE = pe[:S, :]
    elif positional_type == "both":
        PE = jnp.concatenate([pe[: S // 2, :], pe2[S // 2: S, :]], axis=0)
    else:  # 'both2'
        PE = pe[:S, :] + pe[:S, :]
    return x + PE


if __name__ == "__main__":
    key = jax.random.PRNGKey(0)
    ok = True

    # Small shape consistent with the module's demo usage.
    batch, seq_len, d_embed = 2, 8, 32
    x = jax.random.normal(key, (batch, seq_len, d_embed), dtype=jnp.float32)
    for ptype in ("time", "agent", "both", "both2"):
        out = positional_encoding_forward(x, ptype, d_embed)
        out = jax.block_until_ready(out)
        ref = _reference(x, ptype, d_embed, 2 * seq_len)
        if not jnp.allclose(out, ref, atol=1e-5, rtol=1e-5):
            ok = False
            print(f"MISMATCH for positional_type={ptype}: "
                  f"max abs err {float(jnp.max(jnp.abs(out - ref)))}")

    # A second, slightly larger shape to exercise multi-step batch tiling.
    batch2, seq_len2, d_embed2 = 16, 64, 128
    x2 = jax.random.normal(jax.random.PRNGKey(1),
                           (batch2, seq_len2, d_embed2), dtype=jnp.float32)
    out2 = jax.block_until_ready(
        positional_encoding_forward(x2, "time", d_embed2))
    ref2 = _reference(x2, "time", d_embed2, 2 * seq_len2)
    if not jnp.allclose(out2, ref2, atol=1e-5, rtol=1e-5):
        ok = False
        print("MISMATCH for larger shape: "
              f"max abs err {float(jnp.max(jnp.abs(out2 - ref2)))}")

    if ok:
        print("KERNEL_OK")
</pallas_src>

<mosaic_0001>
module attributes {stable_mosaic.version = 11 : i64} {
  func.func @_pe_add_kernel(%arg0: i32, %arg1: i32, %arg2: memref<2x256xf32, #tpu.memory_space<vmem>>, %arg3: memref<1x256xf32, #tpu.memory_space<vmem>>, %arg4: memref<2x256xf32, #tpu.memory_space<vmem>>) attributes {dimension_semantics = [#tpu.dimension_semantics<parallel>, #tpu.dimension_semantics<parallel>], iteration_bounds = array<i64: 1, 1>, scalar_prefetch = 0 : i64, scratch_operands = 0 : i64, tpu.core_type = #tpu.core_type<tc>, window_params = [{transform_indices = @transform_0, window_bounds = array<i64: 2, 256>}, {pipeline_mode = #tpu.pipeline_mode<synchronous>, transform_indices = @transform_1, window_bounds = array<i64: 1, 256>}, {transform_indices = @transform_2, window_bounds = array<i64: 2, 256>}]} {
    %c0 = arith.constant 0 : index
    %c0_0 = arith.constant 0 : index
    %0 = vector.load %arg2[%c0, %c0_0] : memref<2x256xf32, #tpu.memory_space<vmem>>, vector<2x256xf32>
    %c0_1 = arith.constant 0 : index
    %c0_2 = arith.constant 0 : index
    %1 = vector.load %arg3[%c0_1, %c0_2] : memref<1x256xf32, #tpu.memory_space<vmem>>, vector<1x256xf32>
    %2 = vector.broadcast %1 : vector<1x256xf32> to vector<2x256xf32>
    %3 = arith.addf %0, %2 : vector<2x256xf32>
    %c0_3 = arith.constant 0 : index
    %c0_4 = arith.constant 0 : index
    %4 = vector.load %arg4[%c0_3, %c0_4] : memref<2x256xf32, #tpu.memory_space<vmem>>, vector<2x256xf32>
    tpu.vector_store %arg4[%c0_3, %c0_4], %3 {strides = array<i32>} : memref<2x256xf32, #tpu.memory_space<vmem>>, vector<2x256xf32>,
    return
  }
  func.func @transform_0(%arg0: i32, %arg1: i32) -> (i32, i32) {
    %c0_i32 = arith.constant 0 : i32
    return %arg0, %arg1 : i32, i32
  }
  func.func @transform_1(%arg0: i32, %arg1: i32) -> (i32, i32) {
    %c0_i32 = arith.constant 0 : i32
    %c0_i32_0 = arith.constant 0 : i32
    return %c0_i32, %arg1 : i32, i32
  }
  func.func @transform_2(%arg0: i32, %arg1: i32) -> (i32, i32) {
    %c0_i32 = arith.constant 0 : i32
    return %arg0, %arg1 : i32, i32
  }
}

module attributes {stable_mosaic.version = 11 : i64} {
  func.func @_pe_add_kernel(%arg0: i32, %arg1: i32, %arg2: memref<2x256xf32, #tpu.memory_space<vmem>>, %arg3: memref<1x256xf32, #tpu.memory_space<vmem>>, %arg4: memref<2x256xf32, #tpu.memory_space<vmem>>) attributes {dimension_semantics = [#tpu.dimension_semantics<parallel>, #tpu.dimension_semantics<parallel>], iteration_bounds = array<i64: 1, 1>, scalar_prefetch = 0 : i64, scratch_operands = 0 : i64, tpu.core_type = #tpu.core_type<tc>, window_params = [{transform_indices = @transform_0, window_bounds = array<i64: 2, 256>}, {transform_indices = @transform_1, window_bounds = array<i64: 1, 256>}, {transform_indices = @transform_2, window_bounds = array<i64: 2, 256>}]} {
    %c0 = arith.constant 0 : index
    %c0_0 = arith.constant 0 : index
    %0 = vector.load %arg2[%c0, %c0_0] : memref<2x256xf32, #tpu.memory_space<vmem>>, vector<2x256xf32>
    %c0_1 = arith.constant 0 : index
    %c0_2 = arith.constant 0 : index
    %1 = vector.load %arg3[%c0_1, %c0_2] : memref<1x256xf32, #tpu.memory_space<vmem>>, vector<1x256xf32>
    %2 = vector.broadcast %1 : vector<1x256xf32> to vector<2x256xf32>
    %3 = arith.addf %0, %2 : vector<2x256xf32>
    %c0_3 = arith.constant 0 : index
    %c0_4 = arith.constant 0 : index
    %4 = vector.load %arg4[%c0_3, %c0_4] : memref<2x256xf32, #tpu.memory_space<vmem>>, vector<2x256xf32>
    tpu.vector_store %arg4[%c0_3, %c0_4], %3 {strides = array<i32>} : memref<2x256xf32, #tpu.memory_space<vmem>>, vector<2x256xf32>,
    return
  }
  func.func @transform_0(%arg0: i32, %arg1: i32) -> (i32, i32) {
    %c0_i32 = arith.constant 0 : i32
    return %arg0, %arg1 : i32, i32
  }
  func.func @transform_1(%arg0: i32, %arg1: i32) -> (i32, i32) {
    %c0_i32 = arith.constant 0 : i32
    %c0_i32_0 = arith.constant 0 : i32
    return %c0_i32, %arg1 : i32, i32
  }
  func.func @transform_2(%arg0: i32, %arg1: i32) -> (i32, i32) {
    %c0_i32 = arith.constant 0 : i32
    return %arg0, %arg1 : i32, i32
  }
}

</mosaic_0001>

<llo_original>
// kernel: tpu_custom_call.1
$region0: #{tpu_custom_call.1}
  #allocation0 [shape = 'u32[]', space=smem, size = 0x4, offset = 0x4, fixed_abs, tag = 'smem constant byte address 0x4 - core index']
  #allocation1 [shape = 'u32[144,128]{1,0:T(1,128)}', space=vmem, size = 0x12000, scoped, tag = 'internal scratch']
  %s0 = inlined_call_operand.hbm [shape: f32[2,256], index: 0, kind: input, shape index: {}]
  %s1 = inlined_call_operand.hbm [shape: f32[1,256], index: 1, kind: input, shape index: {}]
  %s2 = inlined_call_operand.hbm [shape: f32[2,256], index: 2, kind: output, shape index: {}]
  %s3 = sld [smem:[#allocation0]]
  $region26: #{tpu_custom_call.1} parent=0
    _
  %s5 = ssub.s32 1, %s3
  %s6 = scalar_select 0, %s5, %s3
  $region1: #{tpu_custom_call.1} parent=0
    #allocation2 [shape = 'u8[2048]{0}', space=vmem, size = 0x800, scoped, tag = 'input window, operand 0, single buffered']
    #allocation3 [shape = 's32[1]{0}', space=sflag, size = 0x4, scoped, tag = 'scoped memory for tpu_custom_call.1']
    #allocation4 [shape = 's32[1]{0}', space=sflag, size = 0x4, scoped, tag = 'scoped memory for tpu_custom_call.1']
    #allocation5 [shape = 'u8[1024]{0}', space=vmem, size = 0x400, scoped, tag = 'input window, operand 1, single buffered']
    #allocation6 [shape = 's32[1]{0}', space=sflag, size = 0x4, scoped, tag = 'scoped memory for tpu_custom_call.1']
    #allocation7 [shape = 'u8[2048]{0}', space=vmem, size = 0x800, scoped, tag = 'output window, operand 0, single buffered']
    %7 = vsyncpa [#allocation3], 0
    %8 = vsyncpa [#allocation6], 0
    %9 = vsyncpa [#allocation4], 0
    // Predicated region
    $region2: #{tpu_custom_call.1} parent=1 // pred_check
      _
    $region3: #{tpu_custom_call.1} parent=1 // pred_check_branch
      %11 = sbr.rel (0) target = $region5
    $region4: #{tpu_custom_call.1} parent=1 // pred_region
      %s13 = ssub.s32 64, 64
      %14 = vsyncadd [#allocation3], %s13
      %s16 = sshll.u32 [#allocation2], 4
      %s17 = int_to_ptr.vmem [resolvable:$true] %s16
      %19 = dma.hbm_to_vmem [thread:$0]  %s0, 64, %s17, [#allocation3]
    $region5: #{tpu_custom_call.1} parent=1 // pred_fallthru
      _
    // Predicated region
    $region6: #{tpu_custom_call.1} parent=1 // pred_check
      _
    $region7: #{tpu_custom_call.1} parent=1 // pred_check_branch
      %21 = sbr.rel (0) target = $region9
    $region8: #{tpu_custom_call.1} parent=1 // pred_region
      %s23 = ssub.s32 32, 32
      %24 = vsyncadd [#allocation6], %s23
      %s26 = sshll.u32 [#allocation5], 4
      %s27 = int_to_ptr.vmem [resolvable:$true] %s26
      %29 = dma.hbm_to_vmem [thread:$0]  %s1, 32, %s27, [#allocation6]
    $region9: #{tpu_custom_call.1} parent=1 // pred_fallthru
      _
    // Predicated region
    $region10: #{tpu_custom_call.1} parent=1 // pred_check
      _
    $region11: #{tpu_custom_call.1} parent=1 // pred_check_branch
      %31 = sbr.rel (0) target = $region13
    $region12: #{tpu_custom_call.1} parent=1 // pred_region
      %32 = dma.done [#allocation3], 64
    $region13: #{tpu_custom_call.1} parent=1 // pred_fallthru
      _
    // Predicated region
    $region14: #{tpu_custom_call.1} parent=1 // pred_check
      _
    $region15: #{tpu_custom_call.1} parent=1 // pred_check_branch
      %34 = sbr.rel (0) target = $region17
    $region16: #{tpu_custom_call.1} parent=1 // pred_region
      %35 = dma.done [#allocation6], 32
    $region17: #{tpu_custom_call.1} parent=1 // pred_fallthru
      _
    %v36 = vld [vmem:[#allocation2] sm:$0xf]
    %v37 = vld [vmem:[#allocation5] sm:$0x3]
    %v39 = vlaneseq
    %v40 = vshrl.u32 %v39, 7
    %v41 = vsub.s32 0, %v40
    %v42 = vrot.slane %v37, %v41
    %v43 = vlaneseq
    %v44 = vshrl.u32 %v43, 7
    %v45 = vsub.s32 1, %v44
    %v46 = vrot.slane %v37, %v45
    %v47 = vcombine.low %v42, %v46
    %v49 = vunpack.c.l.s4 1983009808
    %v50 = vunpack.c.0.s8 %v49
    %v51 = vlaneseq
    %v52 = vshrl.u32 %v51, 7
    %v53 = vsub.s32 %v50, %v52
    %v54 = vrot.slane %v47, %v53
    %v56 = vadd.f32 %v36, %v54
    %57 = vst [vmem:[#allocation7] sm:$0xf] %v56
    // Predicated region
    $region18: #{tpu_custom_call.1} parent=1 // pred_check
      _
    $region19: #{tpu_custom_call.1} parent=1 // pred_check_branch
      %59 = sbr.rel (0) target = $region21
    $region20: #{tpu_custom_call.1} parent=1 // pred_region
      %s61 = ssub.s32 64, 64
      %62 = vsyncadd [#allocation4], %s61
      %s64 = sshll.u32 [#allocation7], 4
      %s65 = int_to_ptr.vmem [resolvable:$true] %s64
      %67 = dma.vmem_to_hbm [thread:$0]  %s65, 64, %s2, [#allocation4]
    $region21: #{tpu_custom_call.1} parent=1 // pred_fallthru
      _
    // Predicated region
    $region22: #{tpu_custom_call.1} parent=1 // pred_check
      _
    $region23: #{tpu_custom_call.1} parent=1 // pred_check_branch
      %69 = sbr.rel (0) target = $region25
    $region24: #{tpu_custom_call.1} parent=1 // pred_region
      %70 = dma.done [#allocation4], 64
    $region25: #{tpu_custom_call.1} parent=1 // pred_fallthru
      _
    %71 = vsyncpa [#allocation3], 1
    %72 = vsyncpa [#allocation6], 1
    %73 = vsyncpa [#allocation4], 1

// kernel: tpu_custom_call.1
$region0: #{tpu_custom_call.1}
  #allocation0 [shape = 'u32[]', space=smem, size = 0x4, offset = 0x4, fixed_abs, tag = 'smem constant byte address 0x4 - core index']
  #allocation1 [shape = 'u32[144,128]{1,0:T(1,128)}', space=vmem, size = 0x12000, scoped, tag = 'internal scratch']
  %s0 = inlined_call_operand.hbm [shape: f32[2,256], index: 0, kind: input, shape index: {}]
  %s1 = inlined_call_operand.hbm [shape: f32[1,256], index: 1, kind: input, shape index: {}]
  %s2 = inlined_call_operand.hbm [shape: f32[2,256], index: 2, kind: output, shape index: {}]
  %s3 = sld [smem:[#allocation0]]
  $region26: #{tpu_custom_call.1} parent=0
    _
  %s5 = ssub.s32 1, %s3
  %s6 = scalar_select 0, %s5, %s3
  $region1: #{tpu_custom_call.1} parent=0
    #allocation2 [shape = 'u8[2048]{0}', space=vmem, size = 0x800, scoped, tag = 'input window, operand 0, single buffered']
    #allocation3 [shape = 's32[1]{0}', space=sflag, size = 0x4, scoped, tag = 'scoped memory for tpu_custom_call.1']
    #allocation4 [shape = 's32[1]{0}', space=sflag, size = 0x4, scoped, tag = 'scoped memory for tpu_custom_call.1']
    #allocation5 [shape = 'u8[1024]{0}', space=vmem, size = 0x400, scoped, tag = 'input window, operand 1, single buffered']
    #allocation6 [shape = 's32[1]{0}', space=sflag, size = 0x4, scoped, tag = 'scoped memory for tpu_custom_call.1']
    #allocation7 [shape = 'u8[2048]{0}', space=vmem, size = 0x800, scoped, tag = 'output window, operand 0, single buffered']
    %7 = vsyncpa [#allocation3], 0
    %8 = vsyncpa [#allocation6], 0
    %9 = vsyncpa [#allocation4], 0
    // Predicated region
    $region2: #{tpu_custom_call.1} parent=1 // pred_check
      _
    $region3: #{tpu_custom_call.1} parent=1 // pred_check_branch
      %11 = sbr.rel (0) target = $region5
    $region4: #{tpu_custom_call.1} parent=1 // pred_region
      %s13 = ssub.s32 64, 64
      %14 = vsyncadd [#allocation3], %s13
      %s16 = sshll.u32 [#allocation2], 4
      %s17 = int_to_ptr.vmem [resolvable:$true] %s16
      %19 = dma.hbm_to_vmem [thread:$0]  %s0, 64, %s17, [#allocation3]
    $region5: #{tpu_custom_call.1} parent=1 // pred_fallthru
      _
    // Predicated region
    $region6: #{tpu_custom_call.1} parent=1 // pred_check
      _
    $region7: #{tpu_custom_call.1} parent=1 // pred_check_branch
      %21 = sbr.rel (0) target = $region9
    $region8: #{tpu_custom_call.1} parent=1 // pred_region
      %s23 = ssub.s32 32, 32
      %24 = vsyncadd [#allocation6], %s23
      %s26 = sshll.u32 [#allocation5], 4
      %s27 = int_to_ptr.vmem [resolvable:$true] %s26
      %29 = dma.hbm_to_vmem [thread:$0]  %s1, 32, %s27, [#allocation6]
    $region9: #{tpu_custom_call.1} parent=1 // pred_fallthru
      _
    // Predicated region
    $region10: #{tpu_custom_call.1} parent=1 // pred_check
      _
    $region11: #{tpu_custom_call.1} parent=1 // pred_check_branch
      %31 = sbr.rel (0) target = $region13
    $region12: #{tpu_custom_call.1} parent=1 // pred_region
      %32 = dma.done [#allocation3], 64
    $region13: #{tpu_custom_call.1} parent=1 // pred_fallthru
      _
    // Predicated region
    $region14: #{tpu_custom_call.1} parent=1 // pred_check
      _
    $region15: #{tpu_custom_call.1} parent=1 // pred_check_branch
      %34 = sbr.rel (0) target = $region17
    $region16: #{tpu_custom_call.1} parent=1 // pred_region
      %35 = dma.done [#allocation6], 32
    $region17: #{tpu_custom_call.1} parent=1 // pred_fallthru
      _
    %v36 = vld [vmem:[#allocation2] sm:$0xf]
    %v37 = vld [vmem:[#allocation5] sm:$0x3]
    %v39 = vlaneseq
    %v40 = vshrl.u32 %v39, 7
    %v41 = vsub.s32 0, %v40
    %v42 = vrot.slane %v37, %v41
    %v43 = vlaneseq
    %v44 = vshrl.u32 %v43, 7
    %v45 = vsub.s32 1, %v44
    %v46 = vrot.slane %v37, %v45
    %v47 = vcombine.low %v42, %v46
    %v49 = vunpack.c.l.s4 1983009808
    %v50 = vunpack.c.0.s8 %v49
    %v51 = vlaneseq
    %v52 = vshrl.u32 %v51, 7
    %v53 = vsub.s32 %v50, %v52
    %v54 = vrot.slane %v47, %v53
    %v56 = vadd.f32 %v36, %v54
    %57 = vst [vmem:[#allocation7] sm:$0xf] %v56
    // Predicated region
    $region18: #{tpu_custom_call.1} parent=1 // pred_check
      _
    $region19: #{tpu_custom_call.1} parent=1 // pred_check_branch
      %59 = sbr.rel (0) target = $region21
    $region20: #{tpu_custom_call.1} parent=1 // pred_region
      %s61 = ssub.s32 64, 64
      %62 = vsyncadd [#allocation4], %s61
      %s64 = sshll.u32 [#allocation7], 4
      %s65 = int_to_ptr.vmem [resolvable:$true] %s64
      %67 = dma.vmem_to_hbm [thread:$0]  %s65, 64, %s2, [#allocation4]
    $region21: #{tpu_custom_call.1} parent=1 // pred_fallthru
      _
    // Predicated region
    $region22: #{tpu_custom_call.1} parent=1 // pred_check
      _
    $region23: #{tpu_custom_call.1} parent=1 // pred_check_branch
      %69 = sbr.rel (0) target = $region25
    $region24: #{tpu_custom_call.1} parent=1 // pred_region
      %70 = dma.done [#allocation4], 64
    $region25: #{tpu_custom_call.1} parent=1 // pred_fallthru
      _
    %71 = vsyncpa [#allocation3], 1
    %72 = vsyncpa [#allocation6], 1
    %73 = vsyncpa [#allocation4], 1

</llo_original>
